<compile_context>
chip_gen: v7x
topology: tpu7x:2x2x1
jax: 0.10.0
libtpu: 0.0.40
codegen_flags: <defaults>
</compile_context>

<pallas_src>
import math

import jax
import jax.numpy as jnp
from jax.experimental import pallas as pl
from jax.experimental.pallas import tpu as pltpu


def _compute_kernel_size(receptive_field, points_per_unit, num_layers):
    receptive_points = receptive_field * points_per_unit
    kernel_size = 1 + (receptive_points - 1) / num_layers
    return int(math.ceil(kernel_size) // 2 * 2 + 1)


def _round_up(x, m):
    return (x + m - 1) // m * m


def _make_stack_kernel(num_layers, K, pad, TL, OS, WB, H, L, Cp, C):
    """Build the fused conv-stack kernel. All sizes are static Python ints."""

    def kernel(x_ref, wdw_ref, wpw_ref, b_ref, o_ref, in_buf, act_buf, in_sem):
        # x_ref  : (B, Cp, L_src)       raw HBM ref (memory_space=ANY)
        # wdw_ref: (num_layers, Cp, K)  depthwise taps
        # wpw_ref: (num_layers, Cp, Cp) pointwise weights
        # b_ref  : (num_layers, Cp, 1)  fused bias (w_pw @ b_dw + b_pw)
        # o_ref  : (1, C, TL)           lane-dense output tile (C, not Cp)
        # in_buf : (2, Cp, WB) VMEM     double-buffered input halo windows
        # act_buf: (2, Cp, WB) VMEM     ping-pong inter-layer activations
        # in_sem : DMA semaphores, one per input slot
        bi = pl.program_id(0)
        ti = pl.program_id(1)
        nT = pl.num_programs(1)
        cur = ti % 2
        nxt = 1 - cur

        def fetch(t_idx, slot):
            pltpu.make_async_copy(
                x_ref.at[bi, :, pl.ds(t_idx * TL, WB)],
                in_buf.at[slot],
                in_sem.at[slot],
            ).start()

        # Prime the pipeline at the start of each batch row (tile axis is
        # sequential "arbitrary"; the batch axis carries megacore parallelism).
        @pl.when(ti == 0)
        def _():
            fetch(0, cur)

        # Prefetch the next tile's halo window while this tile is computed.
        @pl.when(ti + 1 < nT)
        def _():
            fetch(ti + 1, nxt)

        # Wait for this tile's input window.
        pltpu.make_async_copy(
            x_ref.at[bi, :, pl.ds(ti * TL, WB)],
            in_buf.at[cur],
            in_sem.at[cur],
        ).wait()

        start = ti * TL
        if num_layers > 1:
            # Only boundary tiles need the per-layer zero mask; hoist one iota.
            needs_mask = jnp.logical_or(start < H, start + TL + H > L)
            col = jax.lax.broadcasted_iota(jnp.int32, (1, OS), 1)

        for i in range(num_layers):                      # static unroll over layers
            a = in_buf[cur] if i == 0 else act_buf[(i - 1) % 2]   # (Cp, WB)
            wdw_i = wdw_ref[i]                           # (Cp, K)

            # Depthwise conv: K broadcast-MACs on the VPU over lane-shifted views
            # (no im2col, no concatenate, no skewed MXU matmul).
            dw = wdw_i[:, 0:1] * a[:, 0:OS]
            for k in range(1, K):
                dw = dw + wdw_i[:, k:k + 1] * a[:, k:k + OS]

            # Pointwise 1x1 conv on the MXU, f32 accumulate; bias fused; LeakyReLU.
            y = jnp.dot(wpw_ref[i], dw, preferred_element_type=jnp.float32)
            y = y + b_ref[i]
            y = jnp.where(y > 0, y, 0.1 * y)

            if i < num_layers - 1:
                slot = i % 2
                off = start - (H - (i + 1) * pad)        # global coord of column 0

                @pl.when(needs_mask)
                def _(y=y, slot=slot, off=off):
                    g = col + off
                    keep = jnp.logical_and(g >= 0, g < L)
                    act_buf[slot, :, 0:OS] = jnp.where(keep, y, 0.0)

                @pl.when(jnp.logical_not(needs_mask))
                def _(y=y, slot=slot):
                    act_buf[slot, :, 0:OS] = y           # unmasked 128-multiple store
            else:
                o_ref[0] = y[0:C, 0:TL]                  # lane-dense, C channels only

    return kernel


def _fold_layer_params(w_dw, b_dw, w_pw, b_pw, c_pad):
    """Pad channels to c_pad (zeros) and fold both biases into one vector."""
    C, K = w_dw.shape
    w_dw_p = jnp.pad(w_dw, ((0, c_pad - C), (0, 0)))                 # (Cp, K)
    w_pw_p = jnp.pad(w_pw, ((0, c_pad - C), (0, c_pad - C)))         # (Cp, Cp)
    b_dw_p = jnp.pad(b_dw, ((0, c_pad - C), (0, 0)))                 # (Cp, 1)
    b_pw_p = jnp.pad(b_pw, ((0, c_pad - C), (0, 0)))                 # (Cp, 1)
    b = jnp.dot(w_pw_p, b_dw_p) + b_pw_p                             # (Cp, 1)
    return w_dw_p, w_pw_p, b


def conv_forward(x, params, padding, max_tile_l=None):
    """x: (B, C, L) float32 -> (B, C, L). Whole layer stack in one pallas_call."""
    B, C, L = x.shape
    num_layers = len(params)
    K = params[0][0].shape[1]
    assert padding == K // 2, "module uses 'same' padding"

    Cp = _round_up(C, 8)                       # sublane-aligned channel count
    H = num_layers * padding                   # halo needed by the whole stack

    if max_tile_l is None:
        # Large lane-dense tiles amortize the ~0.35us/grid-step overhead; cap so
        # the per-tap (Cp, TL) f32 working set stays register/VMEM friendly.
        max_tile_l = max(256, min(2048, ((1 << 20) // (Cp * 4)) // 128 * 128))
    max_tile_l = _round_up(max_tile_l, 128)

    TL = min(max_tile_l, _round_up(L, 128))    # lane-dense tile (multiple of 128)
    L_pad = _round_up(L, TL)
    nT = L_pad // TL
    # Uniform per-layer compute/store width (multiple of 128 => unmasked stores).
    OS = _round_up(TL + 2 * (num_layers - 1) * padding, 128)
    # Window-buffer width: covers every layer's tap-read extent (OS + K - 1).
    WB = _round_up(OS + 2 * padding, 128)
    L_src = L_pad + WB - TL                    # haloed + lane-padded source length

    folded = [_fold_layer_params(*p, Cp) for p in params]
    wdw_all = jnp.stack([f[0] for f in folded])   # (num_layers, Cp, K)
    wpw_all = jnp.stack([f[1] for f in folded])   # (num_layers, Cp, Cp)
    b_all = jnp.stack([f[2] for f in folded])     # (num_layers, Cp, 1)

    # One up-front zero pad: channel alignment + left halo + right halo/lane pad.
    x_src = jnp.pad(x, ((0, 0), (0, Cp - C), (H, L_src - L - H)))

    kernel = _make_stack_kernel(num_layers, K, padding, TL, OS, WB, H, L, Cp, C)

    out = pl.pallas_call(
        kernel,
        out_shape=jax.ShapeDtypeStruct((B, C, L_pad), jnp.float32),
        grid=(B, nT),
        in_specs=[
            pl.BlockSpec(memory_space=pl.ANY),   # raw HBM; windows DMA'd manually
            pl.BlockSpec((num_layers, Cp, K), lambda bi, ti: (0, 0, 0)),
            pl.BlockSpec((num_layers, Cp, Cp), lambda bi, ti: (0, 0, 0)),
            pl.BlockSpec((num_layers, Cp, 1), lambda bi, ti: (0, 0, 0)),
        ],
        out_specs=pl.BlockSpec((1, C, TL), lambda bi, ti: (bi, 0, ti)),
        scratch_shapes=[
            pltpu.VMEM((2, Cp, WB), jnp.float32),        # in_buf (double buffer)
            pltpu.VMEM((2, Cp, WB), jnp.float32),        # act_buf (ping-pong)
            pltpu.SemaphoreType.DMA((2,)),               # one DMA sem per slot
        ],
        compiler_params=pltpu.CompilerParams(
            # Batch axis gets megacore parallelism; the tile axis must stay
            # sequential so the cross-step DMA prefetch chain is well ordered.
            dimension_semantics=("parallel", "arbitrary"),
            vmem_limit_bytes=32 * 1024 * 1024,           # well under every gen's budget
        ),
    )(x_src, wdw_all, wpw_all, b_all)
    return out[:, :, :L]


def init_conv_params(key, num_layers, num_channels, kernel_size):
    """Deterministic parameter init (PyTorch conv shapes, squeezed)."""
    params = []
    C, K = num_channels, kernel_size
    for _ in range(num_layers):
        key, k1, k2, k3, k4 = jax.random.split(key, 5)
        bound_dw = 1.0 / math.sqrt(K)                # fan_in = 1 * K (groups=C)
        w_dw = jax.random.uniform(k1, (C, K), jnp.float32, -bound_dw, bound_dw)
        b_dw = jax.random.uniform(k2, (C, 1), jnp.float32, -bound_dw, bound_dw)
        bound_pw = 1.0 / math.sqrt(C)                # fan_in = C * 1
        w_pw = jax.random.uniform(k3, (C, C), jnp.float32, -bound_pw, bound_pw)
        b_pw = jax.random.uniform(k4, (C, 1), jnp.float32, -bound_pw, bound_pw)
        params.append((w_dw, b_dw, w_pw, b_pw))
    return params


def conv_forward_ref(x, params, padding):
    """Pure-JAX reference for correctness checking."""
    out = x
    for (w_dw, b_dw, w_pw, b_pw) in params:
        B, C, L = out.shape
        K = w_dw.shape[1]
        xp = jnp.pad(out, ((0, 0), (0, 0), (padding, padding)))
        dw = jnp.zeros((B, C, L), jnp.float32)
        for k in range(K):
            dw = dw + w_dw[None, :, k:k + 1] * xp[:, :, k:k + L]
        dw = dw + b_dw[None]
        pw = jnp.einsum("oc,bcl->bol", w_pw, dw,
                        precision=jax.lax.Precision.HIGHEST) + b_pw[None]
        out = jnp.where(pw > 0, pw, 0.1 * pw)
    return out


if __name__ == "__main__":
    # Conv(receptive_field=4, points_per_unit=2, num_layers=2, num_channels=4)
    receptive_field = 4
    points_per_unit = 2
    num_layers = 2
    num_channels = 4

    kernel_size = _compute_kernel_size(receptive_field, points_per_unit, num_layers)
    padding = kernel_size // 2

    key = jax.random.PRNGKey(0)
    kx, kp, kx2 = jax.random.split(key, 3)
    params = init_conv_params(kp, num_layers, num_channels, kernel_size)

    # Case 1: nominal small shape (single tile; exercises boundary masking).
    B, C, L = 2, num_channels, 16
    x = jax.random.normal(kx, (B, C, L), jnp.float32)
    out = jax.block_until_ready(conv_forward(x, params, padding))
    ref = conv_forward_ref(x, params, padding)
    assert out.shape == (B, C, L)
    assert jnp.allclose(out, ref, atol=1e-4, rtol=1e-4), "mismatch vs reference (case 1)"

    # Case 2: multi-tile path (double-buffered DMA chain, interior + edge tiles).
    L2 = 300
    x2 = jax.random.normal(kx2, (B, C, L2), jnp.float32)
    out2 = jax.block_until_ready(conv_forward(x2, params, padding, max_tile_l=128))
    ref2 = conv_forward_ref(x2, params, padding)
    assert out2.shape == (B, C, L2)
    assert jnp.allclose(out2, ref2, atol=1e-4, rtol=1e-4), "mismatch vs reference (case 2)"

    print("KERNEL_OK")
</pallas_src>

<mosaic_0001>
module attributes {stable_mosaic.version = 11 : i64} {
  func.func @kernel(%arg0: i32, %arg1: i32, %arg2: memref<2x8x384xf32, #tpu.memory_space<any>>, %arg3: memref<2x8x5xf32, #tpu.memory_space<vmem>>, %arg4: memref<2x8x8xf32, #tpu.memory_space<vmem>>, %arg5: memref<2x8x1xf32, #tpu.memory_space<vmem>>, %arg6: memref<1x4x128xf32, #tpu.memory_space<vmem>>, %arg7: memref<2x8x384xf32, #tpu.memory_space<vmem>>, %arg8: memref<2x8x384xf32, #tpu.memory_space<vmem>>, %arg9: memref<2x!tpu.dma_semaphore, #tpu.memory_space<semaphore_mem>>) attributes {dimension_semantics = [#tpu.dimension_semantics<parallel>, #tpu.dimension_semantics<arbitrary>], iteration_bounds = array<i64: 2, 1>, scalar_prefetch = 0 : i64, scratch_operands = 3 : i64, tpu.core_type = #tpu.core_type<tc>, window_params = [{}, {pipeline_mode = #tpu.pipeline_mode<synchronous>, transform_indices = @transform_1, window_bounds = array<i64: 2, 8, 5>}, {pipeline_mode = #tpu.pipeline_mode<synchronous>, transform_indices = @transform_2, window_bounds = array<i64: 2, 8, 8>}, {pipeline_mode = #tpu.pipeline_mode<synchronous>, transform_indices = @transform_3, window_bounds = array<i64: 2, 8, 1>}, {transform_indices = @transform_4, window_bounds = array<i64: 1, 4, 128>}]} {
    %c2_i32 = arith.constant 2 : i32
    %c0_i32 = arith.constant 0 : i32
    %0 = arith.cmpi eq, %c2_i32, %c0_i32 : i32
    %c1_i32 = arith.constant 1 : i32
    %1 = arith.select %0, %c1_i32, %c2_i32 : i32
    %2 = arith.remsi %arg1, %1 : i32
    %c0_i32_0 = arith.constant 0 : i32
    %3 = arith.cmpi ne, %2, %c0_i32_0 : i32
    %c0_i32_1 = arith.constant 0 : i32
    %4 = arith.cmpi slt, %2, %c0_i32_1 : i32
    %c0_i32_2 = arith.constant 0 : i32
    %5 = arith.cmpi slt, %1, %c0_i32_2 : i32
    %6 = arith.xori %4, %5 : i1
    %7 = arith.andi %6, %3 : i1
    %8 = arith.addi %2, %1 : i32
    %9 = arith.select %7, %8, %2 : i32
    %c1_i32_3 = arith.constant 1 : i32
    %10 = arith.subi %c1_i32_3, %9 : i32
    %c0_i32_4 = arith.constant 0 : i32
    %11 = arith.cmpi eq, %arg1, %c0_i32_4 : i32
    %12 = arith.extui %11 : i1 to i32
    %c0_i32_5 = arith.constant 0 : i32
    %13 = arith.cmpi ne, %12, %c0_i32_5 : i32
    scf.if %13 {
      %c0_i32_47 = arith.constant 0 : i32
      %c0_i32_48 = arith.constant 0 : i32
      %123 = tpu.memref_slice %arg2[%arg0, %c0_i32_47, %c0_i32_48] : memref<2x8x384xf32, #tpu.memory_space<any>> -> memref<1x8x384xf32, #tpu.memory_space<any>>
      %124 = tpu.memref_squeeze %123 : memref<1x8x384xf32, #tpu.memory_space<any>> -> memref<8x384xf32, #tpu.memory_space<any>>
      %c0_i32_49 = arith.constant 0 : i32
      %c0_i32_50 = arith.constant 0 : i32
      %125 = tpu.memref_slice %arg7[%9, %c0_i32_49, %c0_i32_50] : memref<2x8x384xf32, #tpu.memory_space<vmem>> -> memref<1x8x384xf32, #tpu.memory_space<vmem>>
      %126 = tpu.memref_squeeze %125 : memref<1x8x384xf32, #tpu.memory_space<vmem>> -> memref<8x384xf32, #tpu.memory_space<vmem>>
      %127 = tpu.memref_slice %arg9[%9] : memref<2x!tpu.dma_semaphore, #tpu.memory_space<semaphore_mem>> -> memref<1x!tpu.dma_semaphore, #tpu.memory_space<semaphore_mem>>
      %128 = tpu.memref_squeeze %127 : memref<1x!tpu.dma_semaphore, #tpu.memory_space<semaphore_mem>> -> memref<!tpu.dma_semaphore, #tpu.memory_space<semaphore_mem>>
      tpu.enqueue_dma source(%124 : memref<8x384xf32, #tpu.memory_space<any>>) target(%126 : memref<8x384xf32, #tpu.memory_space<vmem>>) target_semaphore(%128 : memref<!tpu.dma_semaphore, #tpu.memory_space<semaphore_mem>>)
    } else {
    }
    %c1_i32_6 = arith.constant 1 : i32
    %14 = arith.addi %arg1, %c1_i32_6 : i32
    %c1_i32_7 = arith.constant 1 : i32
    %15 = arith.cmpi slt, %14, %c1_i32_7 : i32
    %16 = arith.extui %15 : i1 to i32
    %c0_i32_8 = arith.constant 0 : i32
    %17 = arith.cmpi ne, %16, %c0_i32_8 : i32
    scf.if %17 {
      %c1_i32_47 = arith.constant 1 : i32
      %123 = arith.addi %arg1, %c1_i32_47 : i32
      %c128_i32_48 = arith.constant 128 : i32
      %124 = arith.muli %123, %c128_i32_48 : i32
      %c0_i32_49 = arith.constant 0 : i32
      %125 = tpu.memref_slice %arg2[%arg0, %c0_i32_49, %124] : memref<2x8x384xf32, #tpu.memory_space<any>> -> memref<1x8x384xf32, #tpu.memory_space<any>>
      %126 = tpu.memref_squeeze %125 : memref<1x8x384xf32, #tpu.memory_space<any>> -> memref<8x384xf32, #tpu.memory_space<any>>
      %c0_i32_50 = arith.constant 0 : i32
      %c0_i32_51 = arith.constant 0 : i32
      %127 = tpu.memref_slice %arg7[%10, %c0_i32_50, %c0_i32_51] : memref<2x8x384xf32, #tpu.memory_space<vmem>> -> memref<1x8x384xf32, #tpu.memory_space<vmem>>
      %128 = tpu.memref_squeeze %127 : memref<1x8x384xf32, #tpu.memory_space<vmem>> -> memref<8x384xf32, #tpu.memory_space<vmem>>
      %129 = tpu.memref_slice %arg9[%10] : memref<2x!tpu.dma_semaphore, #tpu.memory_space<semaphore_mem>> -> memref<1x!tpu.dma_semaphore, #tpu.memory_space<semaphore_mem>>
      %130 = tpu.memref_squeeze %129 : memref<1x!tpu.dma_semaphore, #tpu.memory_space<semaphore_mem>> -> memref<!tpu.dma_semaphore, #tpu.memory_space<semaphore_mem>>
      tpu.enqueue_dma source(%126 : memref<8x384xf32, #tpu.memory_space<any>>) target(%128 : memref<8x384xf32, #tpu.memory_space<vmem>>) target_semaphore(%130 : memref<!tpu.dma_semaphore, #tpu.memory_space<semaphore_mem>>)
    } else {
    }
    %c128_i32 = arith.constant 128 : i32
    %18 = arith.muli %arg1, %c128_i32 : i32
    %c0_i32_9 = arith.constant 0 : i32
    %19 = tpu.memref_slice %arg2[%arg0, %c0_i32_9, %18] : memref<2x8x384xf32, #tpu.memory_space<any>> -> memref<1x8x384xf32, #tpu.memory_space<any>>
    %20 = tpu.memref_squeeze %19 : memref<1x8x384xf32, #tpu.memory_space<any>> -> memref<8x384xf32, #tpu.memory_space<any>>
    %c0_i32_10 = arith.constant 0 : i32
    %c0_i32_11 = arith.constant 0 : i32
    %21 = tpu.memref_slice %arg7[%9, %c0_i32_10, %c0_i32_11] : memref<2x8x384xf32, #tpu.memory_space<vmem>> -> memref<1x8x384xf32, #tpu.memory_space<vmem>>
    %22 = tpu.memref_squeeze %21 : memref<1x8x384xf32, #tpu.memory_space<vmem>> -> memref<8x384xf32, #tpu.memory_space<vmem>>
    %23 = tpu.memref_slice %arg9[%9] : memref<2x!tpu.dma_semaphore, #tpu.memory_space<semaphore_mem>> -> memref<1x!tpu.dma_semaphore, #tpu.memory_space<semaphore_mem>>
    %24 = tpu.memref_squeeze %23 : memref<1x!tpu.dma_semaphore, #tpu.memory_space<semaphore_mem>> -> memref<!tpu.dma_semaphore, #tpu.memory_space<semaphore_mem>>
    tpu.wait_dma2 semaphore(%24 : memref<!tpu.dma_semaphore, #tpu.memory_space<semaphore_mem>>) src(%20 : memref<8x384xf32, #tpu.memory_space<any>>) dst(%22 : memref<8x384xf32, #tpu.memory_space<vmem>>)
    %c128_i32_12 = arith.constant 128 : i32
    %25 = arith.muli %arg1, %c128_i32_12 : i32
    %c4_i32 = arith.constant 4 : i32
    %26 = arith.cmpi slt, %25, %c4_i32 : i32
    %c128_i32_13 = arith.constant 128 : i32
    %27 = arith.addi %25, %c128_i32_13 : i32
    %c4_i32_14 = arith.constant 4 : i32
    %28 = arith.addi %27, %c4_i32_14 : i32
    %c16_i32 = arith.constant 16 : i32
    %29 = arith.cmpi sgt, %28, %c16_i32 : i32
    %30 = arith.ori %26, %29 : i1
    %31 = tpu.iota {dimensions = array<i32: 1>} : vector<1x256xi32>
    %32 = arith.index_cast %9 : i32 to index
    %c0 = arith.constant 0 : index
    %c0_15 = arith.constant 0 : index
    %33 = vector.load %arg7[%32, %c0, %c0_15] : memref<2x8x384xf32, #tpu.memory_space<vmem>>, vector<1x8x384xf32>
    %34 = vector.shape_cast %33 : vector<1x8x384xf32> to vector<8x384xf32>
    %c0_16 = arith.constant 0 : index
    %c0_17 = arith.constant 0 : index
    %c0_18 = arith.constant 0 : index
    %35 = vector.load %arg3[%c0_16, %c0_17, %c0_18] : memref<2x8x5xf32, #tpu.memory_space<vmem>>, vector<1x8x5xf32>
    %36 = vector.shape_cast %35 : vector<1x8x5xf32> to vector<8x5xf32>
    %37 = vector.extract_strided_slice %36 {offsets = [0, 0], sizes = [8, 1], strides = [1, 1]} : vector<8x5xf32> to vector<8x1xf32>
    %38 = vector.extract_strided_slice %34 {offsets = [0, 0], sizes = [8, 256], strides = [1, 1]} : vector<8x384xf32> to vector<8x256xf32>
    %39 = vector.broadcast %37 : vector<8x1xf32> to vector<8x256xf32>
    %40 = arith.mulf %39, %38 : vector<8x256xf32>
    %41 = vector.extract_strided_slice %36 {offsets = [0, 1], sizes = [8, 1], strides = [1, 1]} : vector<8x5xf32> to vector<8x1xf32>
    %42 = vector.extract_strided_slice %34 {offsets = [0, 1], sizes = [8, 256], strides = [1, 1]} : vector<8x384xf32> to vector<8x256xf32>
    %43 = vector.broadcast %41 : vector<8x1xf32> to vector<8x256xf32>
    %44 = arith.mulf %43, %42 : vector<8x256xf32>
    %45 = arith.addf %40, %44 : vector<8x256xf32>
    %46 = vector.extract_strided_slice %36 {offsets = [0, 2], sizes = [8, 1], strides = [1, 1]} : vector<8x5xf32> to vector<8x1xf32>
    %47 = vector.extract_strided_slice %34 {offsets = [0, 2], sizes = [8, 256], strides = [1, 1]} : vector<8x384xf32> to vector<8x256xf32>
    %48 = vector.broadcast %46 : vector<8x1xf32> to vector<8x256xf32>
    %49 = arith.mulf %48, %47 : vector<8x256xf32>
    %50 = arith.addf %45, %49 : vector<8x256xf32>
    %51 = vector.extract_strided_slice %36 {offsets = [0, 3], sizes = [8, 1], strides = [1, 1]} : vector<8x5xf32> to vector<8x1xf32>
    %52 = vector.extract_strided_slice %34 {offsets = [0, 3], sizes = [8, 256], strides = [1, 1]} : vector<8x384xf32> to vector<8x256xf32>
    %53 = vector.broadcast %51 : vector<8x1xf32> to vector<8x256xf32>
    %54 = arith.mulf %53, %52 : vector<8x256xf32>
    %55 = arith.addf %50, %54 : vector<8x256xf32>
    %56 = vector.extract_strided_slice %36 {offsets = [0, 4], sizes = [8, 1], strides = [1, 1]} : vector<8x5xf32> to vector<8x1xf32>
    %57 = vector.extract_strided_slice %34 {offsets = [0, 4], sizes = [8, 256], strides = [1, 1]} : vector<8x384xf32> to vector<8x256xf32>
    %58 = vector.broadcast %56 : vector<8x1xf32> to vector<8x256xf32>
    %59 = arith.mulf %58, %57 : vector<8x256xf32>
    %60 = arith.addf %55, %59 : vector<8x256xf32>
    %c0_19 = arith.constant 0 : index
    %c0_20 = arith.constant 0 : index
    %c0_21 = arith.constant 0 : index
    %61 = vector.load %arg4[%c0_19, %c0_20, %c0_21] : memref<2x8x8xf32, #tpu.memory_space<vmem>>, vector<1x8x8xf32>
    %62 = vector.shape_cast %61 : vector<1x8x8xf32> to vector<8x8xf32>
    %cst = arith.constant dense<0.000000e+00> : vector<8x256xf32>
    %63 = tpu.matmul %62, %60, %cst {dimension_numbers = #tpu.dot_dimension_numbers<[1], [0], [0], [1], [0, 0, 1, 1], [], []>} : vector<8x8xf32>, vector<8x256xf32>, vector<8x256xf32> -> vector<8x256xf32>
    %c0_22 = arith.constant 0 : index
    %c0_23 = arith.constant 0 : index
    %c0_24 = arith.constant 0 : index
    %64 = vector.load %arg5[%c0_22, %c0_23, %c0_24] : memref<2x8x1xf32, #tpu.memory_space<vmem>>, vector<1x8x1xf32>
    %65 = vector.shape_cast %64 : vector<1x8x1xf32> to vector<8x1xf32>
    %66 = vector.broadcast %65 : vector<8x1xf32> to vector<8x256xf32>
    %67 = arith.addf %63, %66 : vector<8x256xf32>
    %cst_25 = arith.constant 0.000000e+00 : f32
    %68 = vector.broadcast %cst_25 : f32 to vector<8x256xf32>
    %69 = arith.cmpf ogt, %67, %68 : vector<8x256xf32>
    %cst_26 = arith.constant 1.000000e-01 : f32
    %70 = vector.broadcast %cst_26 : f32 to vector<8x256xf32>
    %71 = arith.mulf %70, %67 : vector<8x256xf32>
    %72 = arith.select %69, %67, %71 : vector<8x256xi1>, vector<8x256xf32>
    %c2_i32_27 = arith.constant 2 : i32
    %73 = arith.subi %25, %c2_i32_27 : i32
    %74 = arith.extui %30 : i1 to i32
    %c0_i32_28 = arith.constant 0 : i32
    %75 = arith.cmpi ne, %74, %c0_i32_28 : i32
    scf.if %75 {
      %123 = vector.broadcast %73 : i32 to vector<1x256xi32>
      %124 = arith.addi %31, %123 : vector<1x256xi32>
      %c0_i32_47 = arith.constant 0 : i32
      %125 = vector.broadcast %c0_i32_47 : i32 to vector<1x256xi32>
      %126 = arith.cmpi sge, %124, %125 : vector<1x256xi32>
      %c16_i32_48 = arith.constant 16 : i32
      %127 = vector.broadcast %c16_i32_48 : i32 to vector<1x256xi32>
      %128 = arith.cmpi slt, %124, %127 : vector<1x256xi32>
      %129 = arith.andi %126, %128 : vector<1x256xi1>
      %cst_49 = arith.constant 0.000000e+00 : f32
      %130 = vector.shape_cast %129 : vector<1x256xi1> to vector<1x256xi1>
      %131 = vector.broadcast %130 : vector<1x256xi1> to vector<8x256xi1>
      %132 = vector.broadcast %cst_49 : f32 to vector<8x256xf32>
      %133 = arith.select %131, %72, %132 : vector<8x256xi1>, vector<8x256xf32>
      %c0_50 = arith.constant 0 : index
      %c0_51 = arith.constant 0 : index
      %c0_52 = arith.constant 0 : index
      %134 = vector.load %arg8[%c0_50, %c0_51, %c0_52] : memref<2x8x384xf32, #tpu.memory_space<vmem>>, vector<1x8x256xf32>
      %135 = vector.shape_cast %134 : vector<1x8x256xf32> to vector<8x256xf32>
      %136 = vector.shape_cast %133 : vector<8x256xf32> to vector<1x8x256xf32>
      tpu.vector_store %arg8[%c0_50, %c0_51, %c0_52], %136 {strides = array<i32>} : memref<2x8x384xf32, #tpu.memory_space<vmem>>, vector<1x8x256xf32>,
    } else {
    }
    %true = arith.constant true
    %76 = arith.xori %30, %true : i1
    %77 = arith.extui %76 : i1 to i32
    %c0_i32_29 = arith.constant 0 : i32
    %78 = arith.cmpi ne, %77, %c0_i32_29 : i32
    scf.if %78 {
      %c0_47 = arith.constant 0 : index
      %c0_48 = arith.constant 0 : index
      %c0_49 = arith.constant 0 : index
      %123 = vector.load %arg8[%c0_47, %c0_48, %c0_49] : memref<2x8x384xf32, #tpu.memory_space<vmem>>, vector<1x8x256xf32>
      %124 = vector.shape_cast %123 : vector<1x8x256xf32> to vector<8x256xf32>
      %125 = vector.shape_cast %72 : vector<8x256xf32> to vector<1x8x256xf32>
      tpu.vector_store %arg8[%c0_47, %c0_48, %c0_49], %125 {strides = array<i32>} : memref<2x8x384xf32, #tpu.memory_space<vmem>>, vector<1x8x256xf32>,
    } else {
    }
    %c0_30 = arith.constant 0 : index
    %c0_31 = arith.constant 0 : index
    %c0_32 = arith.constant 0 : index
    %79 = vector.load %arg8[%c0_30, %c0_31, %c0_32] : memref<2x8x384xf32, #tpu.memory_space<vmem>>, vector<1x8x384xf32>
    %80 = vector.shape_cast %79 : vector<1x8x384xf32> to vector<8x384xf32>
    %c1 = arith.constant 1 : index
    %c0_33 = arith.constant 0 : index
    %c0_34 = arith.constant 0 : index
    %81 = vector.load %arg3[%c1, %c0_33, %c0_34] : memref<2x8x5xf32, #tpu.memory_space<vmem>>, vector<1x8x5xf32>
    %82 = vector.shape_cast %81 : vector<1x8x5xf32> to vector<8x5xf32>
    %83 = vector.extract_strided_slice %82 {offsets = [0, 0], sizes = [8, 1], strides = [1, 1]} : vector<8x5xf32> to vector<8x1xf32>
    %84 = vector.extract_strided_slice %80 {offsets = [0, 0], sizes = [8, 256], strides = [1, 1]} : vector<8x384xf32> to vector<8x256xf32>
    %85 = vector.broadcast %83 : vector<8x1xf32> to vector<8x256xf32>
    %86 = arith.mulf %85, %84 : vector<8x256xf32>
    %87 = vector.extract_strided_slice %82 {offsets = [0, 1], sizes = [8, 1], strides = [1, 1]} : vector<8x5xf32> to vector<8x1xf32>
    %88 = vector.extract_strided_slice %80 {offsets = [0, 1], sizes = [8, 256], strides = [1, 1]} : vector<8x384xf32> to vector<8x256xf32>
    %89 = vector.broadcast %87 : vector<8x1xf32> to vector<8x256xf32>
    %90 = arith.mulf %89, %88 : vector<8x256xf32>
    %91 = arith.addf %86, %90 : vector<8x256xf32>
    %92 = vector.extract_strided_slice %82 {offsets = [0, 2], sizes = [8, 1], strides = [1, 1]} : vector<8x5xf32> to vector<8x1xf32>
    %93 = vector.extract_strided_slice %80 {offsets = [0, 2], sizes = [8, 256], strides = [1, 1]} : vector<8x384xf32> to vector<8x256xf32>
    %94 = vector.broadcast %92 : vector<8x1xf32> to vector<8x256xf32>
    %95 = arith.mulf %94, %93 : vector<8x256xf32>
    %96 = arith.addf %91, %95 : vector<8x256xf32>
    %97 = vector.extract_strided_slice %82 {offsets = [0, 3], sizes = [8, 1], strides = [1, 1]} : vector<8x5xf32> to vector<8x1xf32>
    %98 = vector.extract_strided_slice %80 {offsets = [0, 3], sizes = [8, 256], strides = [1, 1]} : vector<8x384xf32> to vector<8x256xf32>
    %99 = vector.broadcast %97 : vector<8x1xf32> to vector<8x256xf32>
    %100 = arith.mulf %99, %98 : vector<8x256xf32>
    %101 = arith.addf %96, %100 : vector<8x256xf32>
    %102 = vector.extract_strided_slice %82 {offsets = [0, 4], sizes = [8, 1], strides = [1, 1]} : vector<8x5xf32> to vector<8x1xf32>
    %103 = vector.extract_strided_slice %80 {offsets = [0, 4], sizes = [8, 256], strides = [1, 1]} : vector<8x384xf32> to vector<8x256xf32>
    %104 = vector.broadcast %102 : vector<8x1xf32> to vector<8x256xf32>
    %105 = arith.mulf %104, %103 : vector<8x256xf32>
    %106 = arith.addf %101, %105 : vector<8x256xf32>
    %c1_35 = arith.constant 1 : index
    %c0_36 = arith.constant 0 : index
    %c0_37 = arith.constant 0 : index
    %107 = vector.load %arg4[%c1_35, %c0_36, %c0_37] : memref<2x8x8xf32, #tpu.memory_space<vmem>>, vector<1x8x8xf32>
    %108 = vector.shape_cast %107 : vector<1x8x8xf32> to vector<8x8xf32>
    %cst_38 = arith.constant dense<0.000000e+00> : vector<8x256xf32>
    %109 = tpu.matmul %108, %106, %cst_38 {dimension_numbers = #tpu.dot_dimension_numbers<[1], [0], [0], [1], [0, 0, 1, 1], [], []>} : vector<8x8xf32>, vector<8x256xf32>, vector<8x256xf32> -> vector<8x256xf32>
    %c1_39 = arith.constant 1 : index
    %c0_40 = arith.constant 0 : index
    %c0_41 = arith.constant 0 : index
    %110 = vector.load %arg5[%c1_39, %c0_40, %c0_41] : memref<2x8x1xf32, #tpu.memory_space<vmem>>, vector<1x8x1xf32>
    %111 = vector.shape_cast %110 : vector<1x8x1xf32> to vector<8x1xf32>
    %112 = vector.broadcast %111 : vector<8x1xf32> to vector<8x256xf32>
    %113 = arith.addf %109, %112 : vector<8x256xf32>
    %cst_42 = arith.constant 0.000000e+00 : f32
    %114 = vector.broadcast %cst_42 : f32 to vector<8x256xf32>
    %115 = arith.cmpf ogt, %113, %114 : vector<8x256xf32>
    %cst_43 = arith.constant 1.000000e-01 : f32
    %116 = vector.broadcast %cst_43 : f32 to vector<8x256xf32>
    %117 = arith.mulf %116, %113 : vector<8x256xf32>
    %118 = arith.select %115, %113, %117 : vector<8x256xi1>, vector<8x256xf32>
    %119 = vector.extract_strided_slice %118 {offsets = [0, 0], sizes = [4, 128], strides = [1, 1]} : vector<8x256xf32> to vector<4x128xf32>
    %c0_44 = arith.constant 0 : index
    %c0_45 = arith.constant 0 : index
    %c0_46 = arith.constant 0 : index
    %120 = vector.load %arg6[%c0_44, %c0_45, %c0_46] : memref<1x4x128xf32, #tpu.memory_space<vmem>>, vector<1x4x128xf32>
    %121 = vector.shape_cast %120 : vector<1x4x128xf32> to vector<4x128xf32>
    %122 = vector.shape_cast %119 : vector<4x128xf32> to vector<1x4x128xf32>
    tpu.vector_store %arg6[%c0_44, %c0_45, %c0_46], %122 {strides = array<i32>} : memref<1x4x128xf32, #tpu.memory_space<vmem>>, vector<1x4x128xf32>,
    return
  }
  func.func @transform_1(%arg0: i32, %arg1: i32) -> (i32, i32, i32) {
    %c0_i32 = arith.constant 0 : i32
    %c0_i32_0 = arith.constant 0 : i32
    %c0_i32_1 = arith.constant 0 : i32
    %c0_i32_2 = arith.constant 0 : i32
    return %c0_i32, %c0_i32_0, %c0_i32_1 : i32, i32, i32
  }
  func.func @transform_2(%arg0: i32, %arg1: i32) -> (i32, i32, i32) {
    %c0_i32 = arith.constant 0 : i32
    %c0_i32_0 = arith.constant 0 : i32
    %c0_i32_1 = arith.constant 0 : i32
    %c0_i32_2 = arith.constant 0 : i32
    return %c0_i32, %c0_i32_0, %c0_i32_1 : i32, i32, i32
  }
  func.func @transform_3(%arg0: i32, %arg1: i32) -> (i32, i32, i32) {
    %c0_i32 = arith.constant 0 : i32
    %c0_i32_0 = arith.constant 0 : i32
    %c0_i32_1 = arith.constant 0 : i32
    %c0_i32_2 = arith.constant 0 : i32
    return %c0_i32, %c0_i32_0, %c0_i32_1 : i32, i32, i32
  }
  func.func @transform_4(%arg0: i32, %arg1: i32) -> (i32, i32, i32) {
    %c0_i32 = arith.constant 0 : i32
    %c0_i32_0 = arith.constant 0 : i32
    return %arg0, %c0_i32, %arg1 : i32, i32, i32
  }
}

</mosaic_0001>

<llo_original>
// kernel: tpu_custom_call.1
$region0: #{tpu_custom_call.1}
  #allocation0 [shape = 'u32[]', space=smem, size = 0x4, offset = 0x4, fixed_abs, tag = 'smem constant byte address 0x4 - core index']
  #allocation1 [shape = 'u32[144,128]{1,0:T(1,128)}', space=vmem, size = 0x12000, scoped, tag = 'internal scratch']
  #allocation2 [shape = 'f32[2,8,384]{2,1,0:T(8,128)}', space=vmem, size = 0x6000, scoped, tag = 'scratch operand']
  #allocation3 [shape = 'f32[2,8,384]{2,1,0:T(8,128)}', space=vmem, size = 0x6000, scoped, tag = 'scratch operand']
  #allocation4 [shape = 's32[2]{0}', space=sflag, size = 0x8, scoped, tag = 'scratch operand']
  #allocation7 [shape = 's32[]', space=sflag, size = 0x4, offset = 0, fixed_abs, tag = 'sflag constant byte address 0x0 - dummy sync flag']
  #allocation8 [shape = 's32[]', space=sflag, size = 0x4, offset = 0, fixed_abs, tag = 'sflag constant byte address 0x0 - dummy sync flag']
  #allocation9 [shape = 'u32[]', space=smem, size = 0x4, offset = 0x44, fixed_abs, tag = 'smem constant byte address 0x44 - assertion arg 0']
  #allocation10 [shape = 'u32[]', space=smem, size = 0x4, offset = 0x48, fixed_abs, tag = 'smem constant byte address 0x48 - assertion arg 1']
  #allocation11 [shape = 's32[]', space=sflag, size = 0x4, offset = 0, fixed_abs, tag = 'sflag constant byte address 0x0 - dummy sync flag']
  #allocation12 [shape = 's32[]', space=sflag, size = 0x4, offset = 0, fixed_abs, tag = 'sflag constant byte address 0x0 - dummy sync flag']
  %s0 = inlined_call_operand.hbm [shape: f32[2,8,384], index: 0, kind: input, shape index: {}]
  %s1 = inlined_call_operand.vmem [shape: f32[2,8,5], index: 1, kind: input, shape index: {}]
  %s2 = inlined_call_operand.vmem [shape: f32[2,8,8], index: 2, kind: input, shape index: {}]
  %s3 = inlined_call_operand.vmem [shape: f32[2,8,1], index: 3, kind: input, shape index: {}]
  %s4 = inlined_call_operand.hbm [shape: f32[2,4,128], index: 4, kind: output, shape index: {}]
  %s5 = sld [smem:[#allocation0]]
  $region69: #{tpu_custom_call.1} parent=0
    _
  %s7 = ssub.s32 1, %s5
  %s8 = scalar_select 0, %s7, %s5
  $region1: #{tpu_custom_call.1} parent=0
    #allocation5 [shape = 'u8[4096]{0}', space=vmem, size = 0x1000, scoped, tag = 'output window, operand 0']
    #allocation6 [shape = 's32[2]{0}', space=sflag, size = 0x8, scoped, tag = 'scoped memory for tpu_custom_call.1']
    %9 = vsyncpa [#allocation6], 0
    %s10 = scalar_lea.sflag [#allocation6], 1
    %11 = vsyncpa %s10, 0
    loop: start=0, step=1, limit=4
    $region2: #{tpu_custom_call.1} parent=1 // loop_pre_header
      _
    $region3: #{tpu_custom_call.1} parent=1 // loop_header
      %s13 = sphi 0, %s17
      %p14 = scmp.ge.s32.totalorder %s13, 4
      %s20 = sphi 0, %s32
      %s21 = sphi 0, %s28
      %s22 = sphi 0, %s20
      %s23 = sphi 0, %s21
      %s24 = sphi 0, %s22
      %s25 = sphi 0, %s23
      %s33 = sphi 0, %s33
      %s35 = sphi 0, %s33
      %s36 = sphi 0, %s35
      %s50 = sphi 0, %s36
      %s54 = sphi 0, %s54
      %s56 = sphi 0, %s54
      %s57 = sphi 0, %s56
      %s71 = sphi 0, %s57
      %s75 = sphi 0, %s75
      %s77 = sphi 0, %s75
      %s78 = sphi 0, %s77
      %s92 = sphi 0, %s78
      %s100 = sphi 0, %s102
      %s103 = sphi 0, %s100
      %s104 = sphi 0, %s103
      %s120 = sphi 0, %s104
    $region4: #{tpu_custom_call.1} parent=1 // loop_header_branch
      %16 = sbr.rel (%p14) target = $region8
    $region5: #{tpu_custom_call.1} parent=1 // loop_body
      %s18 = ssub.s32 %s13, 1
      %s19 = ssub.s32 %s13, 2
      %s26 = sadd.s32 1, %s21
      %p27 = scmp.ge.s32.totalorder %s26, 1
      %s28 = scalar_select %p27, 0, %s26
      %s29 = sadd.s32 1, %s20
      %s30 = scalar_select %p27, %s29, %s20
      %p31 = scmp.ge.s32.totalorder %s30, 2
      %s32 = scalar_select %p31, 0, %s30
      %s34 = sadd.s32 %s33, 1
      %p37 = scmp.eq.s32.totalorder %s13, 1
      %p38 = scmp.ne.s32.totalorder %s33, %s35
      %p39 = scmp.eq.s32.totalorder %s13, 0
      %p40 = por %p38, %p39
      %p41 = scmp.ne.s32.totalorder %s33, %s35
      %p42 = scmp.eq.s32.totalorder %s18, 1
      %p43 = por %p41, %p42
      %p44 = scmp.ne.s32.totalorder %s35, %s36
      %p45 = scmp.eq.s32.totalorder %s18, 0
      %p46 = por %p44, %p45
      %p47 = scmp.ne.s32.totalorder %s35, %s36
      %p48 = scmp.eq.s32.totalorder %s19, 1
      %p49 = por %p47, %p48
      %p51 = scmp.ne.s32.totalorder %s36, %s50
      %p52 = scmp.eq.s32.totalorder %s19, 0
      %p53 = por %p51, %p52
      %s55 = sadd.s32 %s54, 1
      %p58 = scmp.eq.s32.totalorder %s13, 1
      %p59 = scmp.ne.s32.totalorder %s54, %s56
      %p60 = scmp.eq.s32.totalorder %s13, 0
      %p61 = por %p59, %p60
      %p62 = scmp.ne.s32.totalorder %s54, %s56
      %p63 = scmp.eq.s32.totalorder %s18, 1
      %p64 = por %p62, %p63
      %p65 = scmp.ne.s32.totalorder %s56, %s57
      %p66 = scmp.eq.s32.totalorder %s18, 0
      %p67 = por %p65, %p66
      %p68 = scmp.ne.s32.totalorder %s56, %s57
      %p69 = scmp.eq.s32.totalorder %s19, 1
      %p70 = por %p68, %p69
      %p72 = scmp.ne.s32.totalorder %s57, %s71
      %p73 = scmp.eq.s32.totalorder %s19, 0
      %p74 = por %p72, %p73
      %s76 = sadd.s32 %s75, 1
      %p79 = scmp.eq.s32.totalorder %s13, 1
      %p80 = scmp.ne.s32.totalorder %s75, %s77
      %p81 = scmp.eq.s32.totalorder %s13, 0
      %p82 = por %p80, %p81
      %p83 = scmp.ne.s32.totalorder %s75, %s77
      %p84 = scmp.eq.s32.totalorder %s18, 1
      %p85 = por %p83, %p84
      %p86 = scmp.ne.s32.totalorder %s77, %s78
      %p87 = scmp.eq.s32.totalorder %s18, 0
      %p88 = por %p86, %p87
      %p89 = scmp.ne.s32.totalorder %s77, %s78
      %p90 = scmp.eq.s32.totalorder %s19, 1
      %p91 = por %p89, %p90
      %p93 = scmp.ne.s32.totalorder %s78, %s92
      %p94 = scmp.eq.s32.totalorder %s19, 0
      %p95 = por %p93, %p94
      %s96 = ssub.s32 %s20, %s32
      %s97 = ssub.s32 %s21, %s28
      %s98 = sor.u32 %s96, %s97
      %p99 = scmp.eq.s32.totalorder %s98, 0
      %s101 = sadd.s32 %s100, 1
      %s102 = scalar_select %p99, %s100, %s101
      %p105 = pneg %p99
      %p106 = scmp.eq.s32.totalorder %s13, 1
      %p107 = por %p105, %p106
      %p108 = scmp.ne.s32.totalorder %s100, %s103
      %p109 = scmp.eq.s32.totalorder %s13, 0
      %p110 = por %p108, %p109
      %p111 = scmp.ne.s32.totalorder %s100, %s103
      %p112 = scmp.eq.s32.totalorder %s18, 1
      %p113 = por %p111, %p112
      %p114 = scmp.ne.s32.totalorder %s103, %s104
      %p115 = scmp.eq.s32.totalorder %s18, 0
      %p116 = por %p114, %p115
      %p117 = scmp.ne.s32.totalorder %s103, %s104
      %p118 = scmp.eq.s32.totalorder %s19, 1
      %p119 = por %p117, %p118
      %p121 = scmp.ne.s32.totalorder %s104, %s120
      %p122 = scmp.eq.s32.totalorder %s19, 0
      %p123 = por %p121, %p122
      %p124 = scmp.le.s32.totalorder 1, %s13
      %p125 = scmp.lt.s32.totalorder %s13, 3
      %p126 = pnand %p124, %p125
      %p127 = pneg %p126
      // Predicated region
      $region9: #{tpu_custom_call.1} parent=5 // pred_check
        _
      $region10: #{tpu_custom_call.1} parent=5 // pred_check_branch
        %129 = sbr.rel (%p126) target = $region12
      $region11: #{tpu_custom_call.1} parent=5 // pred_region
        %s130 = ssub.s32 %s13, 1
        // Predicated region
        $region13: #{tpu_custom_call.1} parent=11 // pred_check
          %p131 = pneg %p46
        $region14: #{tpu_custom_call.1} parent=11 // pred_check_branch
          %133 = sbr.rel (%p131) target = $region16
        $region15: #{tpu_custom_call.1} parent=11 // pred_region
          _
        $region16: #{tpu_custom_call.1} parent=11 // pred_fallthru
          _
        // Predicated region
        $region17: #{tpu_custom_call.1} parent=11 // pred_check
          %p134 = pneg %p67
        $region18: #{tpu_custom_call.1} parent=11 // pred_check_branch
          %136 = sbr.rel (%p134) target = $region20
        $region19: #{tpu_custom_call.1} parent=11 // pred_region
          _
        $region20: #{tpu_custom_call.1} parent=11 // pred_fallthru
          _
        // Predicated region
        $region21: #{tpu_custom_call.1} parent=11 // pred_check
          %p137 = pneg %p88
        $region22: #{tpu_custom_call.1} parent=11 // pred_check_branch
          %139 = sbr.rel (%p137) target = $region24
        $region23: #{tpu_custom_call.1} parent=11 // pred_region
          _
        $region24: #{tpu_custom_call.1} parent=11 // pred_fallthru
          _
      $region12: #{tpu_custom_call.1} parent=5 // pred_fallthru
        _
      %p140 = scmp.lt.s32.totalorder %s13, 2
      // Predicated region
      $region25: #{tpu_custom_call.1} parent=5 // pred_check
        %p141 = pneg %p140
      $region26: #{tpu_custom_call.1} parent=5 // pred_check_branch
        %143 = sbr.rel (%p141) target = $region28
      $region27: #{tpu_custom_call.1} parent=5 // pred_region
        _
      $region28: #{tpu_custom_call.1} parent=5 // pred_fallthru
        _
      %p144 = scmp.le.s32.totalorder 1, %s13
      %p145 = scmp.lt.s32.totalorder %s13, 3
      %p146 = pnand %p144, %p145
      %p147 = pneg %p146
      // Predicated region
      $region29: #{tpu_custom_call.1} parent=5 // pred_check
        _
      $region30: #{tpu_custom_call.1} parent=5 // pred_check_branch
        %149 = sbr.rel (%p146) target = $region32
      $region31: #{tpu_custom_call.1} parent=5 // pred_region
        %s150 = ssub.s32 %s13, 1
        %p151 = pneg %p46
        %p152 = pneg %p43
        %p153 = pneg %p67
        %p154 = pneg %p64
        %p155 = pneg %p88
        %p156 = pneg %p85
        %p157 = pneg %p116
        %p158 = pneg %p113
        %s159 = sand.u32 %s103, 1
        %s160 = scalar_lea.sflag [#allocation6], %s159
        %s161 = sand.u32 %s103, 1
        %s162 = smul.addr %s161, 4
        %s163 = scalar_lea.vmem [#allocation5], %s162
        %p164 = scmp.lt.s32.totalorder %s23, 0
        %s165 = ssub.s32 0, %s23
        %s166 = scalar_select %p164, %s165, %s23
        %s167 = sand.u32 %s166, 1
        %s168 = ssub.s32 0, %s167
        %s169 = scalar_select %p164, %s168, %s167
        %p170 = scmp.ne.s32.totalorder %s169, 0
        %p171 = scmp.lt.s32.totalorder %s169, 0
        %p172 = pnand %p171, %p170
        %p173 = pneg %p172
        %s174 = sadd.s32 %s169, 2
        %s175 = scalar_select %p173, %s174, %s169
        %s176 = ssub.s32 1, %s175
        %p177 = scmp.eq.s32.totalorder %s23, 0
        // Predicated region
        $region33: #{tpu_custom_call.1} parent=31 // pred_check
          %p178 = pneg %p177
        $region34: #{tpu_custom_call.1} parent=31 // pred_check_branch
          %180 = sbr.rel (%p178) target = $region36
        $region35: #{tpu_custom_call.1} parent=31 // pred_region
          %s181 = smul.u32 %s22, 3
          %s182 = smul.addr %s181, 128
          %s183 = scalar_lea.hbm %s0, %s182
          %s184 = smul.u32 %s175, 3
          %s185 = smul.addr %s184, 8
          %s186 = scalar_lea.vmem [#allocation2], %s185
          %s187 = scalar_lea.sflag [#allocation4], %s175
          // Predicated region
          $region37: #{tpu_custom_call.1} parent=35 // pred_check
            _
          $region38: #{tpu_custom_call.1} parent=35 // pred_check_branch
            %189 = sbr.rel target = $region40
          $region39: #{tpu_custom_call.1} parent=35 // pred_region
            %190 = sst [smem:[#allocation9]] [#allocation8]
            %191 = sst [smem:[#allocation10]] [#allocation7]
          $region40: #{tpu_custom_call.1} parent=35 // pred_fallthru
            _
          %193 = shalt.err (0)
          %s195 = sshll.u32 %s186, 4
          %s196 = int_to_ptr.vmem [resolvable:$true] %s195
          %198 = dma.hbm_to_vmem [thread:$0]  %s183, 384, %s196, %s187
        $region36: #{tpu_custom_call.1} parent=31 // pred_fallthru
          _
        %s199 = sadd.s32 %s23, 1
        %p200 = scmp.lt.s32.totalorder %s199, 1
        // Predicated region
        $region41: #{tpu_custom_call.1} parent=31 // pred_check
          %p201 = pneg %p200
        $region42: #{tpu_custom_call.1} parent=31 // pred_check_branch
          %203 = sbr.rel (%p201) target = $region44
        $region43: #{tpu_custom_call.1} parent=31 // pred_region
          %s204 = smul.u32 %s199, 128
          %s205 = sshra.s32 %s204, 7
          %s206 = sand.u32 %s204, 127
          %s207 = smul.u32 %s22, 3
          %s208 = sadd.s32 %s205, %s207
          %s209 = smul.addr %s208, 128
          %s210 = scalar_lea.hbm %s0, %s209
          %s211 = smul.u32 %s176, 3
          %s212 = smul.addr %s211, 8
          %s213 = scalar_lea.vmem [#allocation2], %s212
          %s214 = scalar_lea.sflag [#allocation4], %s176
          // Predicated region
          $region45: #{tpu_custom_call.1} parent=43 // pred_check
            _
          $region46: #{tpu_custom_call.1} parent=43 // pred_check_branch
            %216 = sbr.rel target = $region48
          $region47: #{tpu_custom_call.1} parent=43 // pred_region
            %217 = sst [smem:[#allocation9]] [#allocation12]
            %218 = sst [smem:[#allocation10]] [#allocation11]
          $region48: #{tpu_custom_call.1} parent=43 // pred_fallthru
            _
          %220 = shalt.err (0)
          %s222 = sshll.u32 %s213, 4
          %s223 = int_to_ptr.vmem [resolvable:$true] %s222
          %225 = dma.hbm_to_vmem [thread:$0]  %s210, 384, %s223, %s214
        $region44: #{tpu_custom_call.1} parent=31 // pred_fallthru
          _
        %s226 = smul.u32 %s23, 128
        %s227 = smul.u32 %s175, 3
        %s228 = smul.addr %s227, 8
        %s229 = scalar_lea.vmem [#allocation2], %s228
        %s230 = scalar_lea.sflag [#allocation4], %s175
        %s231 = smul.u32 8, 1
        %s232 = smul.u32 %s231, 3
        %s233 = sshll.u32 %s232, 4
        %234 = dma.done %s230, %s233
        %p235 = scmp.lt.s32.totalorder %s226, 4
        %s236 = sadd.s32 %s226, 132
        %p237 = scmp.gt.s32.totalorder %s236, 16
        %p238 = por %p235, %p237
        %v239 = vlaneseq
        %v240 = vand.u32 %v239, 127
        %v241 = vadd.s32 %v240, 128
        %v242 = vld [vmem:[%s229] sm:$0xff]
        %v243 = vld [vmem:[%s229 + $0x8] sm:$0xff]
        %v244 = vld [vmem:[%s229 + $0x10] sm:$0xff]
        %v245 = vld [vmem:[%s1] sm:$0xff]
        %247 = vset.pattern.permute.xlu0 0
        %248 = vperm.xlu0 %247, %v245
        %v249 = vpop.permute.xlu0 %248
        %v251 = vmul.f32 %v249, %v242
        %v252 = vmul.f32 %v249, %v243
        %253 = vset.pattern.permute.xlu0 1
        %254 = vperm.xlu0 %253, %v245
        %v255 = vpop.permute.xlu0 %254
        %v257 = vmul.f32 %v255, %v242
        %v258 = vmul.f32 %v255, %v243
        %v259 = vmul.f32 %v255, %v244
        %263 = vrot.lane.b32.xlu0 %v257, 127
        %v264 = vpop.permute.xlu0 %263
        %265 = vrot.lane.b32.xlu0 %v258, 127
        %v266 = vpop.permute.xlu0 %265
        %267 = vrot.lane.b32.xlu0 %v259, 127
        %v268 = vpop.permute.xlu0 %267
        %vm269 = vcmask 1039360
        %v270 = vsel %vm269, %v264, %v266
        %v271 = vsel %vm269, %v266, %v268
        %v274 = vadd.f32 %v251, %v270
        %v275 = vadd.f32 %v252, %v271
        %276 = vset.pattern.permute.xlu0 2
        %277 = vperm.xlu0 %276, %v245
        %v278 = vpop.permute.xlu0 %277
        %v280 = vmul.f32 %v278, %v242
        %v281 = vmul.f32 %v278, %v243
        %v282 = vmul.f32 %v278, %v244
        %286 = vrot.lane.b32.xlu0 %v280, 126
        %v287 = vpop.permute.xlu0 %286
        %288 = vrot.lane.b32.xlu0 %v281, 126
        %v289 = vpop.permute.xlu0 %288
        %290 = vrot.lane.b32.xlu0 %v282, 126
        %v291 = vpop.permute.xlu0 %290
        %vm292 = vcmask 1031168
        %v293 = vsel %vm292, %v287, %v289
        %v294 = vsel %vm292, %v289, %v291
        %v297 = vadd.f32 %v274, %v293
        %v298 = vadd.f32 %v275, %v294
        %299 = vset.pattern.permute.xlu0 3
        %300 = vperm.xlu0 %299, %v245
        %v301 = vpop.permute.xlu0 %300
        %v303 = vmul.f32 %v301, %v242
        %v304 = vmul.f32 %v301, %v243
        %v305 = vmul.f32 %v301, %v244
        %309 = vrot.lane.b32.xlu0 %v303, 125
        %v310 = vpop.permute.xlu0 %309
        %311 = vrot.lane.b32.xlu0 %v304, 125
        %v312 = vpop.permute.xlu0 %311
        %313 = vrot.lane.b32.xlu0 %v305, 125
        %v314 = vpop.permute.xlu0 %313
        %vm315 = vcmask 1022976
        %v316 = vsel %vm315, %v310, %v312
        %v317 = vsel %vm315, %v312, %v314
        %v320 = vadd.f32 %v297, %v316
        %v321 = vadd.f32 %v298, %v317
        %322 = vset.pattern.permute.xlu0 4
        %323 = vperm.xlu0 %322, %v245
        %v324 = vpop.permute.xlu0 %323
        %v326 = vmul.f32 %v324, %v242
        %v327 = vmul.f32 %v324, %v243
        %v328 = vmul.f32 %v324, %v244
        %332 = vrot.lane.b32.xlu0 %v326, 124
        %v333 = vpop.permute.xlu0 %332
        %334 = vrot.lane.b32.xlu0 %v327, 124
        %v335 = vpop.permute.xlu0 %334
        %336 = vrot.lane.b32.xlu0 %v328, 124
        %v337 = vpop.permute.xlu0 %336
        %vm338 = vcmask 1014784
        %v339 = vsel %vm338, %v333, %v335
        %v340 = vsel %vm338, %v335, %v337
        %v343 = vadd.f32 %v320, %v339
        %v344 = vadd.f32 %v321, %v340
        %v345 = vld [vmem:[%s2] sm:$0xff]
        %v346 = vld [vmem:[%s3] sm:$0xff]
        %348 = vset.pattern.permute.xlu0 0
        %349 = vperm.xlu0 %348, %v346
        %v350 = vpop.permute.xlu0 %349
        %vm352 = vcmask 64512
        %v354 = vsel %vm352, %v345, 0
        %356 = vmatprep.subr.mxu0 %v344
        %357 = vmatpush1.msra.mxu0 %v343
        %358 = vmatprep.subr.mxu0 0.0
        %359 = vmatpush1.msra.mxu0 0.0
        %360 = vmatprep.subr.mxu0 0.0
        %361 = vmatpush1.msra.mxu0 0.0
        %362 = vmatprep.subr.mxu0 0.0
        %363 = vmatpush1.msra.mxu0 0.0
        %364 = vmatprep.subr.mxu0 0.0
        %365 = vmatpush1.msra.mxu0 0.0
        %366 = vmatprep.subr.mxu0 0.0
        %367 = vmatpush1.msra.mxu0 0.0
        %368 = vmatprep.subr.mxu0 0.0
        %369 = vmatpush1.msra.mxu0 0.0
        %370 = vmatprep.subr.mxu0 0.0
        %371 = vmatpush1.msra.mxu0 0.0
        %372 = vmatprep.subr.mxu0 0.0
        %373 = vmatpush1.msra.mxu0 0.0
        %374 = vmatprep.subr.mxu0 0.0
        %375 = vmatpush1.msra.mxu0 0.0
        %376 = vmatprep.subr.mxu0 0.0
        %377 = vmatpush1.msra.mxu0 0.0
        %378 = vmatprep.subr.mxu0 0.0
        %379 = vmatpush1.msra.mxu0 0.0
        %380 = vmatprep.subr.mxu0 0.0
        %381 = vmatpush1.msra.mxu0 0.0
        %382 = vmatprep.subr.mxu0 0.0
        %383 = vmatpush1.msra.mxu0 0.0
        %384 = vmatprep.subr.mxu0 0.0
        %385 = vmatpush1.msra.mxu0 0.0
        %386 = vmatprep.subr.mxu0 0.0
        %387 = vmatpush1.msra.mxu0 0.0
        %388 = vmatprep.subr.mxu0 0.0
        %389 = vmatpush1.msra.mxu0 0.0
        %390 = vmatprep.subr.mxu0 0.0
        %391 = vmatpush1.msra.mxu0 0.0
        %392 = vmatprep.subr.mxu0 0.0
        %393 = vmatpush1.msra.mxu0 0.0
        %394 = vmatprep.subr.mxu0 0.0
        %395 = vmatpush1.msra.mxu0 0.0
        %396 = vmatprep.subr.mxu0 0.0
        %397 = vmatpush1.msra.mxu0 0.0
        %398 = vmatprep.subr.mxu0 0.0
        %399 = vmatpush1.msra.mxu0 0.0
        %400 = vmatprep.subr.mxu0 0.0
        %401 = vmatpush1.msra.mxu0 0.0
        %402 = vmatprep.subr.mxu0 0.0
        %403 = vmatpush1.msra.mxu0 0.0
        %404 = vmatprep.subr.mxu0 0.0
        %405 = vmatpush1.msra.mxu0 0.0
        %406 = vmatprep.subr.mxu0 0.0
        %407 = vmatpush1.msra.mxu0 0.0
        %408 = vmatprep.subr.mxu0 0.0
        %409 = vmatpush1.msra.mxu0 0.0
        %410 = vmatprep.subr.mxu0 0.0
        %411 = vmatpush1.msra.mxu0 0.0
        %412 = vmatprep.subr.mxu0 0.0
        %413 = vmatpush1.msra.mxu0 0.0
        %414 = vmatprep.subr.mxu0 0.0
        %415 = vmatpush1.msra.mxu0 0.0
        %416 = vmatprep.subr.mxu0 0.0
        %417 = vmatpush1.msra.mxu0 0.0
        %418 = vmatprep.subr.mxu0 0.0
        %419 = vmatpush1.msra.mxu0 0.0
        %420 = vmatprep.mubr.f32.mxu0 0.0
        %421 = vmatmul.mubr.f32.gmra.mrb[0].mxu0 %v354
        %v422 = vpop.f32.mrb[0].mxu0
        %v423 = vadd.f32 %v350, %v422
        %v424 = vpop.f32.mrb[0].mxu0
        %v425 = vadd.f32 %v350, %v424
        %426 = vdwg.mxu0
        %vm427 = vcmp.gt.f32.partialorder %v423, 0.0
        %vm428 = vcmp.gt.f32.partialorder %v425, 0.0
        %v429 = vmul.f32 %v423, 0.1
        %v430 = vmul.f32 %v425, 0.1
        %v431 = vsel %vm427, %v423, %v429
        %v432 = vsel %vm428, %v425, %v430
        %s433 = ssub.s32 %s226, 2
        // Predicated region
        $region49: #{tpu_custom_call.1} parent=31 // pred_check
          %p434 = pneg %p238
        $region50: #{tpu_custom_call.1} parent=31 // pred_check_branch
          %436 = sbr.rel (%p434) target = $region52
        $region51: #{tpu_custom_call.1} parent=31 // pred_region
          %v437 = vstv %s433
          %v438 = vadd.s32 %v240, %v437
          %v439 = vadd.s32 %v241, %v437
          %vm440 = vcmp.ge.s32.totalorder %v438, 0
          %vm441 = vcmp.ge.s32.totalorder %v439, 0
          %vm442 = vcmp.lt.s32.totalorder %v438, 16
          %vm443 = vcmp.lt.s32.totalorder %v439, 16
          %vm444 = vmand %vm440, %vm442
          %vm445 = vmand %vm441, %vm443
          %v446 = vsel %vm444, 1, 0
          %v447 = vsel %vm445, 1, 0
          %vm448 = vcmp.eq.s32.totalorder %v446, 1
          %vm449 = vcmp.eq.s32.totalorder %v447, 1
          %v450 = vsel %vm448, %v431, 0.0
          %v451 = vsel %vm449, %v432, 0.0
          %452 = vst [vmem:[#allocation3] sm:$0xff] %v450
          %453 = vst [vmem:[#allocation3 + $0x8] sm:$0xff] %v451
        $region52: #{tpu_custom_call.1} parent=31 // pred_fallthru
          _
        %p454 = pneg %p238
        // Predicated region
        $region53: #{tpu_custom_call.1} parent=31 // pred_check
          _
        $region54: #{tpu_custom_call.1} parent=31 // pred_check_branch
          %456 = sbr.rel (%p238) target = $region56
        $region55: #{tpu_custom_call.1} parent=31 // pred_region
          %457 = vst [vmem:[#allocation3] sm:$0xff] %v431
          %458 = vst [vmem:[#allocation3 + $0x8] sm:$0xff] %v432
        $region56: #{tpu_custom_call.1} parent=31 // pred_fallthru
          _
        %v459 = vld [vmem:[#allocation3] sm:$0xff]
        %v460 = vld [vmem:[#allocation3 + $0x8] sm:$0xff]
        %v461 = vld [vmem:[#allocation3 + $0x10] sm:$0xff]
        %s462 = scalar_lea.vmem %s1, 8
        %v463 = vld [vmem:[%s462] sm:$0xff]
        %465 = vset.pattern.permute.xlu0 0
        %466 = vperm.xlu0 %465, %v463
        %v467 = vpop.permute.xlu0 %466
        %v469 = vmul.f32 %v467, %v459
        %v470 = vmul.f32 %v467, %v460
        %471 = vset.pattern.permute.xlu0 1
        %472 = vperm.xlu0 %471, %v463
        %v473 = vpop.permute.xlu0 %472
        %v475 = vmul.f32 %v473, %v459
        %v476 = vmul.f32 %v473, %v460
        %v477 = vmul.f32 %v473, %v461
        %481 = vrot.lane.b32.xlu0 %v475, 127
        %v482 = vpop.permute.xlu0 %481
        %483 = vrot.lane.b32.xlu0 %v476, 127
        %v484 = vpop.permute.xlu0 %483
        %485 = vrot.lane.b32.xlu0 %v477, 127
        %v486 = vpop.permute.xlu0 %485
        %v487 = vsel %vm269, %v482, %v484
        %v488 = vsel %vm269, %v484, %v486
        %v491 = vadd.f32 %v469, %v487
        %v492 = vadd.f32 %v470, %v488
        %493 = vset.pattern.permute.xlu0 2
        %494 = vperm.xlu0 %493, %v463
        %v495 = vpop.permute.xlu0 %494
        %v497 = vmul.f32 %v495, %v459
        %v498 = vmul.f32 %v495, %v460
        %v499 = vmul.f32 %v495, %v461
        %503 = vrot.lane.b32.xlu0 %v497, 126
        %v504 = vpop.permute.xlu0 %503
        %505 = vrot.lane.b32.xlu0 %v498, 126
        %v506 = vpop.permute.xlu0 %505
        %507 = vrot.lane.b32.xlu0 %v499, 126
        %v508 = vpop.permute.xlu0 %507
        %v509 = vsel %vm292, %v504, %v506
        %v510 = vsel %vm292, %v506, %v508
        %v513 = vadd.f32 %v491, %v509
        %v514 = vadd.f32 %v492, %v510
        %515 = vset.pattern.permute.xlu0 3
        %516 = vperm.xlu0 %515, %v463
        %v517 = vpop.permute.xlu0 %516
        %v519 = vmul.f32 %v517, %v459
        %v520 = vmul.f32 %v517, %v460
        %v521 = vmul.f32 %v517, %v461
        %525 = vrot.lane.b32.xlu0 %v519, 125
        %v526 = vpop.permute.xlu0 %525
        %527 = vrot.lane.b32.xlu0 %v520, 125
        %v528 = vpop.permute.xlu0 %527
        %529 = vrot.lane.b32.xlu0 %v521, 125
        %v530 = vpop.permute.xlu0 %529
        %v531 = vsel %vm315, %v526, %v528
        %v532 = vsel %vm315, %v528, %v530
        %v535 = vadd.f32 %v513, %v531
        %v536 = vadd.f32 %v514, %v532
        %537 = vset.pattern.permute.xlu0 4
        %538 = vperm.xlu0 %537, %v463
        %v539 = vpop.permute.xlu0 %538
        %v541 = vmul.f32 %v539, %v459
        %v542 = vmul.f32 %v539, %v460
        %v543 = vmul.f32 %v539, %v461
        %547 = vrot.lane.b32.xlu0 %v541, 124
        %v548 = vpop.permute.xlu0 %547
        %549 = vrot.lane.b32.xlu0 %v542, 124
        %v550 = vpop.permute.xlu0 %549
        %551 = vrot.lane.b32.xlu0 %v543, 124
        %v552 = vpop.permute.xlu0 %551
        %v553 = vsel %vm338, %v548, %v550
        %v554 = vsel %vm338, %v550, %v552
        %v557 = vadd.f32 %v535, %v553
        %v558 = vadd.f32 %v536, %v554
        %s559 = scalar_lea.vmem %s2, 8
        %v560 = vld [vmem:[%s559] sm:$0xff]
        %s561 = scalar_lea.vmem %s3, 8
        %v562 = vld [vmem:[%s561] sm:$0xff]
        %564 = vset.pattern.permute.xlu0 0
        %565 = vperm.xlu0 %564, %v562
        %v566 = vpop.permute.xlu0 %565
        %v569 = vsel %vm352, %v560, 0
        %571 = vmatprep.subr.mxu0 %v558
        %572 = vmatpush1.msra.mxu0 %v557
        %573 = vmatprep.subr.mxu0 0.0
        %574 = vmatpush1.msra.mxu0 0.0
        %575 = vmatprep.subr.mxu0 0.0
        %576 = vmatpush1.msra.mxu0 0.0
        %577 = vmatprep.subr.mxu0 0.0
        %578 = vmatpush1.msra.mxu0 0.0
        %579 = vmatprep.subr.mxu0 0.0
        %580 = vmatpush1.msra.mxu0 0.0
        %581 = vmatprep.subr.mxu0 0.0
        %582 = vmatpush1.msra.mxu0 0.0
        %583 = vmatprep.subr.mxu0 0.0
        %584 = vmatpush1.msra.mxu0 0.0
        %585 = vmatprep.subr.mxu0 0.0
        %586 = vmatpush1.msra.mxu0 0.0
        %587 = vmatprep.subr.mxu0 0.0
        %588 = vmatpush1.msra.mxu0 0.0
        %589 = vmatprep.subr.mxu0 0.0
        %590 = vmatpush1.msra.mxu0 0.0
        %591 = vmatprep.subr.mxu0 0.0
        %592 = vmatpush1.msra.mxu0 0.0
        %593 = vmatprep.subr.mxu0 0.0
        %594 = vmatpush1.msra.mxu0 0.0
        %595 = vmatprep.subr.mxu0 0.0
        %596 = vmatpush1.msra.mxu0 0.0
        %597 = vmatprep.subr.mxu0 0.0
        %598 = vmatpush1.msra.mxu0 0.0
        %599 = vmatprep.subr.mxu0 0.0
        %600 = vmatpush1.msra.mxu0 0.0
        %601 = vmatprep.subr.mxu0 0.0
        %602 = vmatpush1.msra.mxu0 0.0
        %603 = vmatprep.subr.mxu0 0.0
        %604 = vmatpush1.msra.mxu0 0.0
        %605 = vmatprep.subr.mxu0 0.0
        %606 = vmatpush1.msra.mxu0 0.0
        %607 = vmatprep.subr.mxu0 0.0
        %608 = vmatpush1.msra.mxu0 0.0
        %609 = vmatprep.subr.mxu0 0.0
        %610 = vmatpush1.msra.mxu0 0.0
        %611 = vmatprep.subr.mxu0 0.0
        %612 = vmatpush1.msra.mxu0 0.0
        %613 = vmatprep.subr.mxu0 0.0
        %614 = vmatpush1.msra.mxu0 0.0
        %615 = vmatprep.subr.mxu0 0.0
        %616 = vmatpush1.msra.mxu0 0.0
        %617 = vmatprep.subr.mxu0 0.0
        %618 = vmatpush1.msra.mxu0 0.0
        %619 = vmatprep.subr.mxu0 0.0
        %620 = vmatpush1.msra.mxu0 0.0
        %621 = vmatprep.subr.mxu0 0.0
        %622 = vmatpush1.msra.mxu0 0.0
        %623 = vmatprep.subr.mxu0 0.0
        %624 = vmatpush1.msra.mxu0 0.0
        %625 = vmatprep.subr.mxu0 0.0
        %626 = vmatpush1.msra.mxu0 0.0
        %627 = vmatprep.subr.mxu0 0.0
        %628 = vmatpush1.msra.mxu0 0.0
        %629 = vmatprep.subr.mxu0 0.0
        %630 = vmatpush1.msra.mxu0 0.0
        %631 = vmatprep.subr.mxu0 0.0
        %632 = vmatpush1.msra.mxu0 0.0
        %633 = vmatprep.subr.mxu0 0.0
        %634 = vmatpush1.msra.mxu0 0.0
        %635 = vmatprep.mubr.f32.mxu0 0.0
        %636 = vmatmul.mubr.f32.gmra.mrb[0].mxu0 %v569
        %v637 = vpop.f32.mrb[0].mxu0
        %v638 = vadd.f32 %v566, %v637
        %v639 = vpop.f32.mrb[0].mxu0
        %640 = vdwg.mxu0
        %vm641 = vcmp.gt.f32.partialorder %v638, 0.0
        %v642 = vmul.f32 %v638, 0.1
        %v643 = vsel %vm641, %v638, %v642
        %644 = vst [vmem:[%s163] sm:$0xf] %v643
        %s645 = sand.u32 %s103, 1
        %s646 = scalar_lea.sflag [#allocation6], %s645
        %s647 = sand.u32 %s103, 1
        %s648 = smul.addr %s647, 4
        %s649 = scalar_lea.vmem [#allocation5], %s648
        // Predicated region
        $region57: #{tpu_custom_call.1} parent=31 // pred_check
          %p650 = pneg %p113
        $region58: #{tpu_custom_call.1} parent=31 // pred_check_branch
          %652 = sbr.rel (%p650) target = $region60
        $region59: #{tpu_custom_call.1} parent=31 // pred_region
          %s654 = ssub.s32 64, 64
          %655 = vsyncadd %s646, %s654
          %s656 = sadd.s32 %s23, %s22
          %s657 = smul.addr %s656, 64
          %s658 = scalar_lea.hbm %s4, %s657
          %s660 = sshll.u32 %s649, 4
          %s661 = int_to_ptr.vmem [resolvable:$true] %s660
          %663 = dma.vmem_to_hbm [thread:$0]  %s661, 64, %s658, %s646
        $region60: #{tpu_custom_call.1} parent=31 // pred_fallthru
          _
      $region32: #{tpu_custom_call.1} parent=5 // pred_fallthru
        _
      %p664 = scmp.le.s32.totalorder 2, %s13
      // Predicated region
      $region61: #{tpu_custom_call.1} parent=5 // pred_check
        %p665 = pneg %p664
      $region62: #{tpu_custom_call.1} parent=5 // pred_check_branch
        %667 = sbr.rel (%p665) target = $region64
      $region63: #{tpu_custom_call.1} parent=5 // pred_region
        %s668 = ssub.s32 %s13, 2
        // Predicated region
        $region65: #{tpu_custom_call.1} parent=63 // pred_check
          %p669 = pneg %p119
        $region66: #{tpu_custom_call.1} parent=63 // pred_check_branch
          %671 = sbr.rel (%p669) target = $region68
        $region67: #{tpu_custom_call.1} parent=63 // pred_region
          %s672 = sand.u32 %s104, 1
          %s673 = scalar_lea.sflag [#allocation6], %s672
          %s674 = sand.u32 %s104, 1
          %s675 = smul.addr %s674, 4
          %s676 = scalar_lea.vmem [#allocation5], %s675
          %677 = dma.done %s673, 64
        $region68: #{tpu_custom_call.1} parent=63 // pred_fallthru
          _
      $region64: #{tpu_custom_call.1} parent=5 // pred_fallthru
        _
    $region6: #{tpu_custom_call.1} parent=1 // loop_footer
      %s17 = sadd.s32 1, %s13
    $region7: #{tpu_custom_call.1} parent=1 // loop_footer_branch
      %12 = sbr.rel target = $region3
    $region8: #{tpu_custom_call.1} parent=1 // loop_exit
      _
    %678 = vsyncpa [#allocation6], 1
    %s679 = scalar_lea.sflag [#allocation6], 1
    %680 = vsyncpa %s679, 1
  %681 = vsyncmov [#allocation4]
  %s682 = vpop.sfrf %681
  %p683 = scmp.eq.s32.totalorder %s682, 0
  %p684 = pneg %p683
  %686 = shalt.err (%p684)
  %s687 = scalar_lea.sflag [#allocation4], 1
  %688 = vsyncmov %s687
  %s689 = vpop.sfrf %688
  %p690 = scmp.eq.s32.totalorder %s689, 0
  %p691 = pneg %p690
  %693 = shalt.err (%p691)

</llo_original>
